<compile_context>
chip_gen: v7x
topology: tpu7x:2x2x1
jax: 0.10.0
libtpu: 0.0.40
codegen_flags: <defaults>
</compile_context>

<pallas_src>
import jax
import jax.numpy as jnp
import numpy as np
from jax.experimental import pallas as pl
from jax.experimental.pallas import tpu as pltpu


def _bidir_lstm_fused_kernel(x_ref, wih_ref, whh_ref, b_ref, y_ref):
    # x_ref   : (T*Bp, 2D)   rows = (time-major, padded batch); cols = [x_fwd | x_bwd]
    # wih_ref : (2D, 8H)     block-diagonal packed input->gate weights (both dirs)
    # whh_ref : (2H, 8H)     block-diagonal packed hidden->gate weights (both dirs)
    # b_ref   : (1, 8H)      packed combined bias (b_ih + b_hh, both dirs)
    # y_ref   : (Bp, T*2H)   lane-dense output: step t lives in lanes [t*2H, (t+1)*2H)
    Bp = y_ref.shape[0]
    H2 = whh_ref.shape[0]            # 2H: fused hidden width [h_fwd | h_bwd]
    T = y_ref.shape[1] // H2
    S = 3 * H2                       # sigmoid lanes: i,f,o for both directions

    # Phase 1: batched input projection for all T steps (one MXU matmul, M = T*Bp)
    # with the bias folded in. Gate lane order: [i_f,i_b, f_f,f_b, o_f,o_b, g_f,g_b].
    xg = jnp.dot(x_ref[...], wih_ref[...],
                 preferred_element_type=jnp.float32) + b_ref[...]   # (T*Bp, 8H)

    whh = whh_ref[...]               # (2H, 8H), held live across the recurrence

    # Phase 2: sequential recurrence, fully unrolled (T small & static).
    h = jnp.zeros((Bp, H2), jnp.float32)     # [h_fwd | h_bwd] along lanes
    c = jnp.zeros((Bp, H2), jnp.float32)
    for t in range(T):
        # Aligned (8,128) slice of xg + single dependent matmul per step.
        gates = xg[t * Bp:(t + 1) * Bp, :] + jnp.dot(
            h, whh, preferred_element_type=jnp.float32)              # (Bp, 8H)

        sig = jax.nn.sigmoid(gates[:, :S])       # one EUP issue: i,f,o (both dirs)
        g = jnp.tanh(gates[:, S:])               # one EUP issue: g (both dirs)
        i = sig[:, 0:H2]
        f = sig[:, H2:2 * H2]
        o = sig[:, 2 * H2:S]

        c = f * c + i * g
        h = o * jnp.tanh(c)

        # Lane-dense store: one aligned 32-lane slab per step; the whole output
        # is exactly two fully-utilized (8,128) tiles written back once.
        y_ref[:, t * H2:(t + 1) * H2] = h.astype(y_ref.dtype)


def _pack_params(w_ih_f, w_hh_f, b_ih_f, b_hh_f,
                 w_ih_b, w_hh_b, b_ih_b, b_hh_b, H):
    """Pack PyTorch-layout LSTM params (gate row order [i,f,g,o]) into the
    block-diagonal, gate-permuted layout used by the fused kernel."""
    D = w_ih_f.shape[1]

    def gsplit(w):  # (4H, X) -> i, f, g, o blocks of (H, X)
        return w[0:H], w[H:2 * H], w[2 * H:3 * H], w[3 * H:4 * H]

    i_f, f_f, g_f, o_f = gsplit(w_ih_f)
    i_b, f_b, g_b, o_b = gsplit(w_ih_b)
    Zd = jnp.zeros((D, H), jnp.float32)
    # packed column order: [i_f, i_b, f_f, f_b, o_f, o_b, g_f, g_b]
    wih_top = jnp.concatenate([i_f.T, Zd, f_f.T, Zd, o_f.T, Zd, g_f.T, Zd], axis=1)
    wih_bot = jnp.concatenate([Zd, i_b.T, Zd, f_b.T, Zd, o_b.T, Zd, g_b.T], axis=1)
    wih_p = jnp.concatenate([wih_top, wih_bot], axis=0)          # (2D, 8H)

    hi_f, hf_f, hg_f, ho_f = gsplit(w_hh_f)
    hi_b, hf_b, hg_b, ho_b = gsplit(w_hh_b)
    Zh = jnp.zeros((H, H), jnp.float32)
    whh_top = jnp.concatenate([hi_f.T, Zh, hf_f.T, Zh, ho_f.T, Zh, hg_f.T, Zh], axis=1)
    whh_bot = jnp.concatenate([Zh, hi_b.T, Zh, hf_b.T, Zh, ho_b.T, Zh, hg_b.T], axis=1)
    whh_p = jnp.concatenate([whh_top, whh_bot], axis=0)          # (2H, 8H)

    b_f = b_ih_f + b_hh_f
    b_b = b_ih_b + b_hh_b
    bi_f, bf_f, bg_f, bo_f = b_f[0:H], b_f[H:2 * H], b_f[2 * H:3 * H], b_f[3 * H:4 * H]
    bi_b, bf_b, bg_b, bo_b = b_b[0:H], b_b[H:2 * H], b_b[2 * H:3 * H], b_b[3 * H:4 * H]
    bias_p = jnp.concatenate(
        [bi_f, bi_b, bf_f, bf_b, bo_f, bo_b, bg_f, bg_b])[None, :]  # (1, 8H)

    return wih_p, whh_p, bias_p


@jax.jit
def bidir_lstm_pallas(x, w_ih_f, w_hh_f, b_ih_f, b_hh_f,
                      w_ih_b, w_hh_b, b_ih_b, b_hh_b):
    """x: (T, B, D); weights in PyTorch layout: w_ih (4H, D), w_hh (4H, H), biases (4H,).
    Returns (T, B, 2H): forward hidden in [..., :H], backward in [..., H:]."""
    T, B, D = x.shape
    H = w_hh_f.shape[1]
    Bp = ((B + 7) // 8) * 8          # pad batch to a full 8-sublane tile

    wih_p, whh_p, bias_p = _pack_params(
        w_ih_f, w_hh_f, b_ih_f, b_hh_f, w_ih_b, w_hh_b, b_ih_b, b_hh_b, H)

    # x2[t] = [x_t | x_{T-1-t}]: forward stream and backward stream share the
    # same batch rows; the block-diagonal weights keep them independent.
    x2 = jnp.concatenate([x, x[::-1]], axis=-1)                      # (T, B, 2D)
    if Bp != B:
        x2 = jnp.concatenate(
            [x2, jnp.zeros((T, Bp - B, 2 * D), x2.dtype)], axis=1)   # (T, Bp, 2D)
    x2_flat = x2.reshape(T * Bp, 2 * D)

    out = pl.pallas_call(
        _bidir_lstm_fused_kernel,
        out_shape=jax.ShapeDtypeStruct((Bp, T * 2 * H), jnp.float32),
        grid=(1,),
        in_specs=[
            pl.BlockSpec((T * Bp, 2 * D), lambda i: (0, 0)),
            pl.BlockSpec((2 * D, 8 * H), lambda i: (0, 0)),
            pl.BlockSpec((2 * H, 8 * H), lambda i: (0, 0)),
            pl.BlockSpec((1, 8 * H), lambda i: (0, 0)),
        ],
        out_specs=pl.BlockSpec((Bp, T * 2 * H), lambda i: (0, 0)),
        compiler_params=pltpu.CompilerParams(
            dimension_semantics=("arbitrary",),
        ),
    )(x2_flat, wih_p, whh_p, bias_p)                                 # (Bp, T*2H)

    # Unpack: drop batch padding, split time, reverse the backward half back
    # into time order (it was produced in processing order T-1-t).
    out = out[:B].reshape(B, T, 2 * H).transpose(1, 0, 2)            # (T, B, 2H)
    return jnp.concatenate([out[:, :, :H], out[::-1, :, H:]], axis=-1)


def bidir_lstm_ref(x, w_ih_f, w_hh_f, b_ih_f, b_hh_f,
                   w_ih_b, w_hh_b, b_ih_b, b_hh_b):
    """Pure-JAX reference (matches PyTorch nn.LSTM forward semantics)."""
    H = w_hh_f.shape[1]

    def run(w_ih, w_hh, b_ih, b_hh, xs):
        def step(carry, xt):
            h, c = carry
            gates = xt @ w_ih.T + h @ w_hh.T + b_ih + b_hh
            i, f, g, o = jnp.split(gates, 4, axis=-1)
            i = jax.nn.sigmoid(i)
            f = jax.nn.sigmoid(f)
            g = jnp.tanh(g)
            o = jax.nn.sigmoid(o)
            c = f * c + i * g
            h = o * jnp.tanh(c)
            return (h, c), h

        B = xs.shape[1]
        h0 = jnp.zeros((B, H), jnp.float32)
        c0 = jnp.zeros((B, H), jnp.float32)
        _, hs = jax.lax.scan(step, (h0, c0), xs)
        return hs

    fwd = run(w_ih_f, w_hh_f, b_ih_f, b_hh_f, x)
    bwd = run(w_ih_b, w_hh_b, b_ih_b, b_hh_b, x[::-1])[::-1]
    return jnp.concatenate([fwd, bwd], axis=-1)


if __name__ == "__main__":
    # Module config: LSTM(input_size=16, output_size=32, depth=1) -> per-dir H=16.
    D = 16          # input_size
    OUT = 32        # output_size (must be even)
    H = OUT // 2    # per-direction hidden
    T = 8           # sequence length
    B = 4           # batch

    key = jax.random.PRNGKey(0)
    kx, k1, k2, k3, k4, k5, k6, k7, k8 = jax.random.split(key, 9)
    bound = 1.0 / np.sqrt(H)

    def u(k, shape):
        return jax.random.uniform(k, shape, jnp.float32, -bound, bound)

    # PyTorch parameter shapes: weight_ih (4H, D), weight_hh (4H, H), biases (4H,)
    w_ih_f, w_ih_b = u(k1, (4 * H, D)), u(k2, (4 * H, D))
    w_hh_f, w_hh_b = u(k3, (4 * H, H)), u(k4, (4 * H, H))
    b_ih_f, b_ih_b = u(k5, (4 * H,)), u(k6, (4 * H,))
    b_hh_f, b_hh_b = u(k7, (4 * H,)), u(k8, (4 * H,))

    x = jax.random.normal(kx, (T, B, D), jnp.float32)

    y = jax.block_until_ready(bidir_lstm_pallas(
        x, w_ih_f, w_hh_f, b_ih_f, b_hh_f, w_ih_b, w_hh_b, b_ih_b, b_hh_b))
    y_ref = jax.block_until_ready(bidir_lstm_ref(
        x, w_ih_f, w_hh_f, b_ih_f, b_hh_f, w_ih_b, w_hh_b, b_ih_b, b_hh_b))
    np.testing.assert_allclose(np.asarray(y), np.asarray(y_ref), rtol=1e-5, atol=1e-5)

    print("KERNEL_OK")
</pallas_src>

<mosaic_0001>
module attributes {stable_mosaic.version = 11 : i64} {
  func.func @_bidir_lstm_fused_kernel(%arg0: i32, %arg1: memref<64x32xf32, #tpu.memory_space<vmem>>, %arg2: memref<32x128xf32, #tpu.memory_space<vmem>>, %arg3: memref<32x128xf32, #tpu.memory_space<vmem>>, %arg4: memref<1x128xf32, #tpu.memory_space<vmem>>, %arg5: memref<8x256xf32, #tpu.memory_space<vmem>>) attributes {dimension_semantics = [#tpu.dimension_semantics<arbitrary>], iteration_bounds = array<i64: 1>, scalar_prefetch = 0 : i64, scratch_operands = 0 : i64, tpu.core_type = #tpu.core_type<tc>, window_params = [{pipeline_mode = #tpu.pipeline_mode<synchronous>, transform_indices = @transform_0, window_bounds = array<i64: 64, 32>}, {pipeline_mode = #tpu.pipeline_mode<synchronous>, transform_indices = @transform_1, window_bounds = array<i64: 32, 128>}, {pipeline_mode = #tpu.pipeline_mode<synchronous>, transform_indices = @transform_2, window_bounds = array<i64: 32, 128>}, {pipeline_mode = #tpu.pipeline_mode<synchronous>, transform_indices = @transform_3, window_bounds = array<i64: 1, 128>}, {pipeline_mode = #tpu.pipeline_mode<synchronous>, transform_indices = @transform_4, window_bounds = array<i64: 8, 256>}]} {
    %c0 = arith.constant 0 : index
    %c0_0 = arith.constant 0 : index
    %0 = vector.load %arg1[%c0, %c0_0] : memref<64x32xf32, #tpu.memory_space<vmem>>, vector<64x32xf32>
    %c0_1 = arith.constant 0 : index
    %c0_2 = arith.constant 0 : index
    %1 = vector.load %arg2[%c0_1, %c0_2] : memref<32x128xf32, #tpu.memory_space<vmem>>, vector<32x128xf32>
    %cst = arith.constant dense<0.000000e+00> : vector<64x128xf32>
    %2 = tpu.matmul %0, %1, %cst {dimension_numbers = #tpu.dot_dimension_numbers<[1], [0], [0], [1], [0, 0, 1, 1], [], []>} : vector<64x32xf32>, vector<32x128xf32>, vector<64x128xf32> -> vector<64x128xf32>
    %c0_3 = arith.constant 0 : index
    %c0_4 = arith.constant 0 : index
    %3 = vector.load %arg4[%c0_3, %c0_4] : memref<1x128xf32, #tpu.memory_space<vmem>>, vector<1x128xf32>
    %4 = vector.broadcast %3 : vector<1x128xf32> to vector<64x128xf32>
    %5 = arith.addf %2, %4 : vector<64x128xf32>
    %c0_5 = arith.constant 0 : index
    %c0_6 = arith.constant 0 : index
    %6 = vector.load %arg3[%c0_5, %c0_6] : memref<32x128xf32, #tpu.memory_space<vmem>>, vector<32x128xf32>
    %cst_7 = arith.constant 0.000000e+00 : f32
    %7 = vector.broadcast %cst_7 : f32 to vector<8x32xf32>
    %cst_8 = arith.constant 0.000000e+00 : f32
    %8 = vector.broadcast %cst_8 : f32 to vector<8x32xf32>
    %9 = vector.extract_strided_slice %5 {offsets = [0, 0], sizes = [8, 128], strides = [1, 1]} : vector<64x128xf32> to vector<8x128xf32>
    %cst_9 = arith.constant dense<0.000000e+00> : vector<8x128xf32>
    %10 = tpu.matmul %7, %6, %cst_9 {dimension_numbers = #tpu.dot_dimension_numbers<[1], [0], [0], [1], [0, 0, 1, 1], [], []>} : vector<8x32xf32>, vector<32x128xf32>, vector<8x128xf32> -> vector<8x128xf32>
    %11 = arith.addf %9, %10 : vector<8x128xf32>
    %12 = vector.extract_strided_slice %11 {offsets = [0, 0], sizes = [8, 96], strides = [1, 1]} : vector<8x128xf32> to vector<8x96xf32>
    %13 = arith.negf %12 : vector<8x96xf32>
    %14 = math.exp %13 : vector<8x96xf32>
    %cst_10 = arith.constant 1.000000e+00 : f32
    %15 = vector.broadcast %cst_10 : f32 to vector<8x96xf32>
    %16 = arith.addf %15, %14 : vector<8x96xf32>
    %17 = arith.divf %15, %16 : vector<8x96xf32>
    %18 = vector.extract_strided_slice %11 {offsets = [0, 96], sizes = [8, 32], strides = [1, 1]} : vector<8x128xf32> to vector<8x32xf32>
    %19 = math.tanh %18 : vector<8x32xf32>
    %20 = vector.extract_strided_slice %17 {offsets = [0, 0], sizes = [8, 32], strides = [1, 1]} : vector<8x96xf32> to vector<8x32xf32>
    %21 = vector.extract_strided_slice %17 {offsets = [0, 32], sizes = [8, 32], strides = [1, 1]} : vector<8x96xf32> to vector<8x32xf32>
    %22 = vector.extract_strided_slice %17 {offsets = [0, 64], sizes = [8, 32], strides = [1, 1]} : vector<8x96xf32> to vector<8x32xf32>
    %23 = arith.mulf %21, %8 : vector<8x32xf32>
    %24 = arith.mulf %20, %19 : vector<8x32xf32>
    %25 = arith.addf %23, %24 : vector<8x32xf32>
    %26 = math.tanh %25 : vector<8x32xf32>
    %27 = arith.mulf %22, %26 : vector<8x32xf32>
    %c0_11 = arith.constant 0 : index
    %c0_12 = arith.constant 0 : index
    %28 = vector.load %arg5[%c0_11, %c0_12] : memref<8x256xf32, #tpu.memory_space<vmem>>, vector<8x32xf32>
    tpu.vector_store %arg5[%c0_11, %c0_12], %27 {strides = array<i32>} : memref<8x256xf32, #tpu.memory_space<vmem>>, vector<8x32xf32>,
    %29 = vector.extract_strided_slice %5 {offsets = [8, 0], sizes = [8, 128], strides = [1, 1]} : vector<64x128xf32> to vector<8x128xf32>
    %cst_13 = arith.constant dense<0.000000e+00> : vector<8x128xf32>
    %30 = tpu.matmul %27, %6, %cst_13 {dimension_numbers = #tpu.dot_dimension_numbers<[1], [0], [0], [1], [0, 0, 1, 1], [], []>} : vector<8x32xf32>, vector<32x128xf32>, vector<8x128xf32> -> vector<8x128xf32>
    %31 = arith.addf %29, %30 : vector<8x128xf32>
    %32 = vector.extract_strided_slice %31 {offsets = [0, 0], sizes = [8, 96], strides = [1, 1]} : vector<8x128xf32> to vector<8x96xf32>
    %33 = arith.negf %32 : vector<8x96xf32>
    %34 = math.exp %33 : vector<8x96xf32>
    %cst_14 = arith.constant 1.000000e+00 : f32
    %35 = vector.broadcast %cst_14 : f32 to vector<8x96xf32>
    %36 = arith.addf %35, %34 : vector<8x96xf32>
    %37 = arith.divf %35, %36 : vector<8x96xf32>
    %38 = vector.extract_strided_slice %31 {offsets = [0, 96], sizes = [8, 32], strides = [1, 1]} : vector<8x128xf32> to vector<8x32xf32>
    %39 = math.tanh %38 : vector<8x32xf32>
    %40 = vector.extract_strided_slice %37 {offsets = [0, 0], sizes = [8, 32], strides = [1, 1]} : vector<8x96xf32> to vector<8x32xf32>
    %41 = vector.extract_strided_slice %37 {offsets = [0, 32], sizes = [8, 32], strides = [1, 1]} : vector<8x96xf32> to vector<8x32xf32>
    %42 = vector.extract_strided_slice %37 {offsets = [0, 64], sizes = [8, 32], strides = [1, 1]} : vector<8x96xf32> to vector<8x32xf32>
    %43 = arith.mulf %41, %25 : vector<8x32xf32>
    %44 = arith.mulf %40, %39 : vector<8x32xf32>
    %45 = arith.addf %43, %44 : vector<8x32xf32>
    %46 = math.tanh %45 : vector<8x32xf32>
    %47 = arith.mulf %42, %46 : vector<8x32xf32>
    %c0_15 = arith.constant 0 : index
    %c32 = arith.constant 32 : index
    %48 = vector.load %arg5[%c0_15, %c32] : memref<8x256xf32, #tpu.memory_space<vmem>>, vector<8x32xf32>
    tpu.vector_store %arg5[%c0_15, %c32], %47 {strides = array<i32>} : memref<8x256xf32, #tpu.memory_space<vmem>>, vector<8x32xf32>,
    %49 = vector.extract_strided_slice %5 {offsets = [16, 0], sizes = [8, 128], strides = [1, 1]} : vector<64x128xf32> to vector<8x128xf32>
    %cst_16 = arith.constant dense<0.000000e+00> : vector<8x128xf32>
    %50 = tpu.matmul %47, %6, %cst_16 {dimension_numbers = #tpu.dot_dimension_numbers<[1], [0], [0], [1], [0, 0, 1, 1], [], []>} : vector<8x32xf32>, vector<32x128xf32>, vector<8x128xf32> -> vector<8x128xf32>
    %51 = arith.addf %49, %50 : vector<8x128xf32>
    %52 = vector.extract_strided_slice %51 {offsets = [0, 0], sizes = [8, 96], strides = [1, 1]} : vector<8x128xf32> to vector<8x96xf32>
    %53 = arith.negf %52 : vector<8x96xf32>
    %54 = math.exp %53 : vector<8x96xf32>
    %cst_17 = arith.constant 1.000000e+00 : f32
    %55 = vector.broadcast %cst_17 : f32 to vector<8x96xf32>
    %56 = arith.addf %55, %54 : vector<8x96xf32>
    %57 = arith.divf %55, %56 : vector<8x96xf32>
    %58 = vector.extract_strided_slice %51 {offsets = [0, 96], sizes = [8, 32], strides = [1, 1]} : vector<8x128xf32> to vector<8x32xf32>
    %59 = math.tanh %58 : vector<8x32xf32>
    %60 = vector.extract_strided_slice %57 {offsets = [0, 0], sizes = [8, 32], strides = [1, 1]} : vector<8x96xf32> to vector<8x32xf32>
    %61 = vector.extract_strided_slice %57 {offsets = [0, 32], sizes = [8, 32], strides = [1, 1]} : vector<8x96xf32> to vector<8x32xf32>
    %62 = vector.extract_strided_slice %57 {offsets = [0, 64], sizes = [8, 32], strides = [1, 1]} : vector<8x96xf32> to vector<8x32xf32>
    %63 = arith.mulf %61, %45 : vector<8x32xf32>
    %64 = arith.mulf %60, %59 : vector<8x32xf32>
    %65 = arith.addf %63, %64 : vector<8x32xf32>
    %66 = math.tanh %65 : vector<8x32xf32>
    %67 = arith.mulf %62, %66 : vector<8x32xf32>
    %c0_18 = arith.constant 0 : index
    %c64 = arith.constant 64 : index
    %68 = vector.load %arg5[%c0_18, %c64] : memref<8x256xf32, #tpu.memory_space<vmem>>, vector<8x32xf32>
    tpu.vector_store %arg5[%c0_18, %c64], %67 {strides = array<i32>} : memref<8x256xf32, #tpu.memory_space<vmem>>, vector<8x32xf32>,
    %69 = vector.extract_strided_slice %5 {offsets = [24, 0], sizes = [8, 128], strides = [1, 1]} : vector<64x128xf32> to vector<8x128xf32>
    %cst_19 = arith.constant dense<0.000000e+00> : vector<8x128xf32>
    %70 = tpu.matmul %67, %6, %cst_19 {dimension_numbers = #tpu.dot_dimension_numbers<[1], [0], [0], [1], [0, 0, 1, 1], [], []>} : vector<8x32xf32>, vector<32x128xf32>, vector<8x128xf32> -> vector<8x128xf32>
    %71 = arith.addf %69, %70 : vector<8x128xf32>
    %72 = vector.extract_strided_slice %71 {offsets = [0, 0], sizes = [8, 96], strides = [1, 1]} : vector<8x128xf32> to vector<8x96xf32>
    %73 = arith.negf %72 : vector<8x96xf32>
    %74 = math.exp %73 : vector<8x96xf32>
    %cst_20 = arith.constant 1.000000e+00 : f32
    %75 = vector.broadcast %cst_20 : f32 to vector<8x96xf32>
    %76 = arith.addf %75, %74 : vector<8x96xf32>
    %77 = arith.divf %75, %76 : vector<8x96xf32>
    %78 = vector.extract_strided_slice %71 {offsets = [0, 96], sizes = [8, 32], strides = [1, 1]} : vector<8x128xf32> to vector<8x32xf32>
    %79 = math.tanh %78 : vector<8x32xf32>
    %80 = vector.extract_strided_slice %77 {offsets = [0, 0], sizes = [8, 32], strides = [1, 1]} : vector<8x96xf32> to vector<8x32xf32>
    %81 = vector.extract_strided_slice %77 {offsets = [0, 32], sizes = [8, 32], strides = [1, 1]} : vector<8x96xf32> to vector<8x32xf32>
    %82 = vector.extract_strided_slice %77 {offsets = [0, 64], sizes = [8, 32], strides = [1, 1]} : vector<8x96xf32> to vector<8x32xf32>
    %83 = arith.mulf %81, %65 : vector<8x32xf32>
    %84 = arith.mulf %80, %79 : vector<8x32xf32>
    %85 = arith.addf %83, %84 : vector<8x32xf32>
    %86 = math.tanh %85 : vector<8x32xf32>
    %87 = arith.mulf %82, %86 : vector<8x32xf32>
    %c0_21 = arith.constant 0 : index
    %c96 = arith.constant 96 : index
    %88 = vector.load %arg5[%c0_21, %c96] : memref<8x256xf32, #tpu.memory_space<vmem>>, vector<8x32xf32>
    tpu.vector_store %arg5[%c0_21, %c96], %87 {strides = array<i32>} : memref<8x256xf32, #tpu.memory_space<vmem>>, vector<8x32xf32>,
    %89 = vector.extract_strided_slice %5 {offsets = [32, 0], sizes = [8, 128], strides = [1, 1]} : vector<64x128xf32> to vector<8x128xf32>
    %cst_22 = arith.constant dense<0.000000e+00> : vector<8x128xf32>
    %90 = tpu.matmul %87, %6, %cst_22 {dimension_numbers = #tpu.dot_dimension_numbers<[1], [0], [0], [1], [0, 0, 1, 1], [], []>} : vector<8x32xf32>, vector<32x128xf32>, vector<8x128xf32> -> vector<8x128xf32>
    %91 = arith.addf %89, %90 : vector<8x128xf32>
    %92 = vector.extract_strided_slice %91 {offsets = [0, 0], sizes = [8, 96], strides = [1, 1]} : vector<8x128xf32> to vector<8x96xf32>
    %93 = arith.negf %92 : vector<8x96xf32>
    %94 = math.exp %93 : vector<8x96xf32>
    %cst_23 = arith.constant 1.000000e+00 : f32
    %95 = vector.broadcast %cst_23 : f32 to vector<8x96xf32>
    %96 = arith.addf %95, %94 : vector<8x96xf32>
    %97 = arith.divf %95, %96 : vector<8x96xf32>
    %98 = vector.extract_strided_slice %91 {offsets = [0, 96], sizes = [8, 32], strides = [1, 1]} : vector<8x128xf32> to vector<8x32xf32>
    %99 = math.tanh %98 : vector<8x32xf32>
    %100 = vector.extract_strided_slice %97 {offsets = [0, 0], sizes = [8, 32], strides = [1, 1]} : vector<8x96xf32> to vector<8x32xf32>
    %101 = vector.extract_strided_slice %97 {offsets = [0, 32], sizes = [8, 32], strides = [1, 1]} : vector<8x96xf32> to vector<8x32xf32>
    %102 = vector.extract_strided_slice %97 {offsets = [0, 64], sizes = [8, 32], strides = [1, 1]} : vector<8x96xf32> to vector<8x32xf32>
    %103 = arith.mulf %101, %85 : vector<8x32xf32>
    %104 = arith.mulf %100, %99 : vector<8x32xf32>
    %105 = arith.addf %103, %104 : vector<8x32xf32>
    %106 = math.tanh %105 : vector<8x32xf32>
    %107 = arith.mulf %102, %106 : vector<8x32xf32>
    %c0_24 = arith.constant 0 : index
    %c128 = arith.constant 128 : index
    %108 = vector.load %arg5[%c0_24, %c128] : memref<8x256xf32, #tpu.memory_space<vmem>>, vector<8x32xf32>
    tpu.vector_store %arg5[%c0_24, %c128], %107 {strides = array<i32>} : memref<8x256xf32, #tpu.memory_space<vmem>>, vector<8x32xf32>,
    %109 = vector.extract_strided_slice %5 {offsets = [40, 0], sizes = [8, 128], strides = [1, 1]} : vector<64x128xf32> to vector<8x128xf32>
    %cst_25 = arith.constant dense<0.000000e+00> : vector<8x128xf32>
    %110 = tpu.matmul %107, %6, %cst_25 {dimension_numbers = #tpu.dot_dimension_numbers<[1], [0], [0], [1], [0, 0, 1, 1], [], []>} : vector<8x32xf32>, vector<32x128xf32>, vector<8x128xf32> -> vector<8x128xf32>
    %111 = arith.addf %109, %110 : vector<8x128xf32>
    %112 = vector.extract_strided_slice %111 {offsets = [0, 0], sizes = [8, 96], strides = [1, 1]} : vector<8x128xf32> to vector<8x96xf32>
    %113 = arith.negf %112 : vector<8x96xf32>
    %114 = math.exp %113 : vector<8x96xf32>
    %cst_26 = arith.constant 1.000000e+00 : f32
    %115 = vector.broadcast %cst_26 : f32 to vector<8x96xf32>
    %116 = arith.addf %115, %114 : vector<8x96xf32>
    %117 = arith.divf %115, %116 : vector<8x96xf32>
    %118 = vector.extract_strided_slice %111 {offsets = [0, 96], sizes = [8, 32], strides = [1, 1]} : vector<8x128xf32> to vector<8x32xf32>
    %119 = math.tanh %118 : vector<8x32xf32>
    %120 = vector.extract_strided_slice %117 {offsets = [0, 0], sizes = [8, 32], strides = [1, 1]} : vector<8x96xf32> to vector<8x32xf32>
    %121 = vector.extract_strided_slice %117 {offsets = [0, 32], sizes = [8, 32], strides = [1, 1]} : vector<8x96xf32> to vector<8x32xf32>
    %122 = vector.extract_strided_slice %117 {offsets = [0, 64], sizes = [8, 32], strides = [1, 1]} : vector<8x96xf32> to vector<8x32xf32>
    %123 = arith.mulf %121, %105 : vector<8x32xf32>
    %124 = arith.mulf %120, %119 : vector<8x32xf32>
    %125 = arith.addf %123, %124 : vector<8x32xf32>
    %126 = math.tanh %125 : vector<8x32xf32>
    %127 = arith.mulf %122, %126 : vector<8x32xf32>
    %c0_27 = arith.constant 0 : index
    %c160 = arith.constant 160 : index
    %128 = vector.load %arg5[%c0_27, %c160] : memref<8x256xf32, #tpu.memory_space<vmem>>, vector<8x32xf32>
    tpu.vector_store %arg5[%c0_27, %c160], %127 {strides = array<i32>} : memref<8x256xf32, #tpu.memory_space<vmem>>, vector<8x32xf32>,
    %129 = vector.extract_strided_slice %5 {offsets = [48, 0], sizes = [8, 128], strides = [1, 1]} : vector<64x128xf32> to vector<8x128xf32>
    %cst_28 = arith.constant dense<0.000000e+00> : vector<8x128xf32>
    %130 = tpu.matmul %127, %6, %cst_28 {dimension_numbers = #tpu.dot_dimension_numbers<[1], [0], [0], [1], [0, 0, 1, 1], [], []>} : vector<8x32xf32>, vector<32x128xf32>, vector<8x128xf32> -> vector<8x128xf32>
    %131 = arith.addf %129, %130 : vector<8x128xf32>
    %132 = vector.extract_strided_slice %131 {offsets = [0, 0], sizes = [8, 96], strides = [1, 1]} : vector<8x128xf32> to vector<8x96xf32>
    %133 = arith.negf %132 : vector<8x96xf32>
    %134 = math.exp %133 : vector<8x96xf32>
    %cst_29 = arith.constant 1.000000e+00 : f32
    %135 = vector.broadcast %cst_29 : f32 to vector<8x96xf32>
    %136 = arith.addf %135, %134 : vector<8x96xf32>
    %137 = arith.divf %135, %136 : vector<8x96xf32>
    %138 = vector.extract_strided_slice %131 {offsets = [0, 96], sizes = [8, 32], strides = [1, 1]} : vector<8x128xf32> to vector<8x32xf32>
    %139 = math.tanh %138 : vector<8x32xf32>
    %140 = vector.extract_strided_slice %137 {offsets = [0, 0], sizes = [8, 32], strides = [1, 1]} : vector<8x96xf32> to vector<8x32xf32>
    %141 = vector.extract_strided_slice %137 {offsets = [0, 32], sizes = [8, 32], strides = [1, 1]} : vector<8x96xf32> to vector<8x32xf32>
    %142 = vector.extract_strided_slice %137 {offsets = [0, 64], sizes = [8, 32], strides = [1, 1]} : vector<8x96xf32> to vector<8x32xf32>
    %143 = arith.mulf %141, %125 : vector<8x32xf32>
    %144 = arith.mulf %140, %139 : vector<8x32xf32>
    %145 = arith.addf %143, %144 : vector<8x32xf32>
    %146 = math.tanh %145 : vector<8x32xf32>
    %147 = arith.mulf %142, %146 : vector<8x32xf32>
    %c0_30 = arith.constant 0 : index
    %c192 = arith.constant 192 : index
    %148 = vector.load %arg5[%c0_30, %c192] : memref<8x256xf32, #tpu.memory_space<vmem>>, vector<8x32xf32>
    tpu.vector_store %arg5[%c0_30, %c192], %147 {strides = array<i32>} : memref<8x256xf32, #tpu.memory_space<vmem>>, vector<8x32xf32>,
    %149 = vector.extract_strided_slice %5 {offsets = [56, 0], sizes = [8, 128], strides = [1, 1]} : vector<64x128xf32> to vector<8x128xf32>
    %cst_31 = arith.constant dense<0.000000e+00> : vector<8x128xf32>
    %150 = tpu.matmul %147, %6, %cst_31 {dimension_numbers = #tpu.dot_dimension_numbers<[1], [0], [0], [1], [0, 0, 1, 1], [], []>} : vector<8x32xf32>, vector<32x128xf32>, vector<8x128xf32> -> vector<8x128xf32>
    %151 = arith.addf %149, %150 : vector<8x128xf32>
    %152 = vector.extract_strided_slice %151 {offsets = [0, 0], sizes = [8, 96], strides = [1, 1]} : vector<8x128xf32> to vector<8x96xf32>
    %153 = arith.negf %152 : vector<8x96xf32>
    %154 = math.exp %153 : vector<8x96xf32>
    %cst_32 = arith.constant 1.000000e+00 : f32
    %155 = vector.broadcast %cst_32 : f32 to vector<8x96xf32>
    %156 = arith.addf %155, %154 : vector<8x96xf32>
    %157 = arith.divf %155, %156 : vector<8x96xf32>
    %158 = vector.extract_strided_slice %151 {offsets = [0, 96], sizes = [8, 32], strides = [1, 1]} : vector<8x128xf32> to vector<8x32xf32>
    %159 = math.tanh %158 : vector<8x32xf32>
    %160 = vector.extract_strided_slice %157 {offsets = [0, 0], sizes = [8, 32], strides = [1, 1]} : vector<8x96xf32> to vector<8x32xf32>
    %161 = vector.extract_strided_slice %157 {offsets = [0, 32], sizes = [8, 32], strides = [1, 1]} : vector<8x96xf32> to vector<8x32xf32>
    %162 = vector.extract_strided_slice %157 {offsets = [0, 64], sizes = [8, 32], strides = [1, 1]} : vector<8x96xf32> to vector<8x32xf32>
    %163 = arith.mulf %161, %145 : vector<8x32xf32>
    %164 = arith.mulf %160, %159 : vector<8x32xf32>
    %165 = arith.addf %163, %164 : vector<8x32xf32>
    %166 = math.tanh %165 : vector<8x32xf32>
    %167 = arith.mulf %162, %166 : vector<8x32xf32>
    %c0_33 = arith.constant 0 : index
    %c224 = arith.constant 224 : index
    %168 = vector.load %arg5[%c0_33, %c224] : memref<8x256xf32, #tpu.memory_space<vmem>>, vector<8x32xf32>
    tpu.vector_store %arg5[%c0_33, %c224], %167 {strides = array<i32>} : memref<8x256xf32, #tpu.memory_space<vmem>>, vector<8x32xf32>,
    return
  }
  func.func @transform_0(%arg0: i32) -> (i32, i32) {
    %c0_i32 = arith.constant 0 : i32
    %c0_i32_0 = arith.constant 0 : i32
    %c0_i32_1 = arith.constant 0 : i32
    return %c0_i32, %c0_i32_0 : i32, i32
  }
  func.func @transform_1(%arg0: i32) -> (i32, i32) {
    %c0_i32 = arith.constant 0 : i32
    %c0_i32_0 = arith.constant 0 : i32
    %c0_i32_1 = arith.constant 0 : i32
    return %c0_i32, %c0_i32_0 : i32, i32
  }
  func.func @transform_2(%arg0: i32) -> (i32, i32) {
    %c0_i32 = arith.constant 0 : i32
    %c0_i32_0 = arith.constant 0 : i32
    %c0_i32_1 = arith.constant 0 : i32
    return %c0_i32, %c0_i32_0 : i32, i32
  }
  func.func @transform_3(%arg0: i32) -> (i32, i32) {
    %c0_i32 = arith.constant 0 : i32
    %c0_i32_0 = arith.constant 0 : i32
    %c0_i32_1 = arith.constant 0 : i32
    return %c0_i32, %c0_i32_0 : i32, i32
  }
  func.func @transform_4(%arg0: i32) -> (i32, i32) {
    %c0_i32 = arith.constant 0 : i32
    %c0_i32_0 = arith.constant 0 : i32
    %c0_i32_1 = arith.constant 0 : i32
    return %c0_i32, %c0_i32_0 : i32, i32
  }
}

</mosaic_0001>

<llo_original>
// kernel: bidir_lstm_pallas.1
$region0: #{bidir_lstm_pallas.1}
  #allocation0 [shape = 'u32[]', space=smem, size = 0x4, offset = 0x4, fixed_abs, tag = 'smem constant byte address 0x4 - core index']
  #allocation1 [shape = 'u32[144,128]{1,0:T(1,128)}', space=vmem, size = 0x12000, scoped, tag = 'internal scratch']
  %s0 = inlined_call_operand.vmem [shape: f32[64,32], index: 0, kind: input, shape index: {}]
  %s1 = inlined_call_operand.vmem [shape: f32[32,128], index: 1, kind: input, shape index: {}]
  %s2 = inlined_call_operand.vmem [shape: f32[32,128], index: 2, kind: input, shape index: {}]
  %s3 = inlined_call_operand.vmem [shape: f32[1,128], index: 3, kind: input, shape index: {}]
  %s4 = inlined_call_operand.vmem [shape: f32[8,256], index: 4, kind: output, shape index: {}]
  %s5 = sld [smem:[#allocation0]]
  $region26: #{bidir_lstm_pallas.1} parent=0
    _
  %s7 = ssub.s32 1, %s5
  %s8 = scalar_select 0, %s7, %s5
  // Predicated region
  $region2: #{bidir_lstm_pallas.1} parent=0 // pred_check
    _
  $region3: #{bidir_lstm_pallas.1} parent=0 // pred_check_branch
    %10 = sbr.rel (0) target = $region5
  $region4: #{bidir_lstm_pallas.1} parent=0 // pred_region
    _
  $region5: #{bidir_lstm_pallas.1} parent=0 // pred_fallthru
    _
  // Predicated region
  $region6: #{bidir_lstm_pallas.1} parent=0 // pred_check
    _
  $region7: #{bidir_lstm_pallas.1} parent=0 // pred_check_branch
    %12 = sbr.rel (0) target = $region9
  $region8: #{bidir_lstm_pallas.1} parent=0 // pred_region
    _
  $region9: #{bidir_lstm_pallas.1} parent=0 // pred_fallthru
    _
  // Predicated region
  $region10: #{bidir_lstm_pallas.1} parent=0 // pred_check
    _
  $region11: #{bidir_lstm_pallas.1} parent=0 // pred_check_branch
    %14 = sbr.rel (0) target = $region13
  $region12: #{bidir_lstm_pallas.1} parent=0 // pred_region
    _
  $region13: #{bidir_lstm_pallas.1} parent=0 // pred_fallthru
    _
  // Predicated region
  $region14: #{bidir_lstm_pallas.1} parent=0 // pred_check
    _
  $region15: #{bidir_lstm_pallas.1} parent=0 // pred_check_branch
    %16 = sbr.rel (0) target = $region17
  $region16: #{bidir_lstm_pallas.1} parent=0 // pred_region
    _
  $region17: #{bidir_lstm_pallas.1} parent=0 // pred_fallthru
    _
  %v17 = vld [vmem:[%s0] sm:$0xff]
  %v18 = vld [vmem:[%s0 + $0x8] sm:$0xff]
  %v19 = vld [vmem:[%s0 + $0x10] sm:$0xff]
  %v20 = vld [vmem:[%s0 + $0x18] sm:$0xff]
  %v21 = vld [vmem:[%s0 + $0x20] sm:$0xff]
  %v22 = vld [vmem:[%s0 + $0x28] sm:$0xff]
  %v23 = vld [vmem:[%s0 + $0x30] sm:$0xff]
  %v24 = vld [vmem:[%s0 + $0x38] sm:$0xff]
  %v25 = vld [vmem:[%s1] sm:$0xff]
  %v26 = vld [vmem:[%s1 + $0x8] sm:$0xff]
  %v27 = vld [vmem:[%s1 + $0x10] sm:$0xff]
  %v28 = vld [vmem:[%s1 + $0x18] sm:$0xff]
  %v29 = vld [vmem:[%s3] sm:$0x1]
  %v31 = vlaneseq
  %v32 = vshrl.u32 %v31, 7
  %v33 = vsub.s32 0, %v32
  %v34 = vrot.slane %v29, %v33
  %vm36 = vcmask 261120
  %v38 = vsel %vm36, %v17, 0
  %v41 = vsel %vm36, %v18, 0
  %v44 = vsel %vm36, %v19, 0
  %v47 = vsel %vm36, %v20, 0
  %v50 = vsel %vm36, %v21, 0
  %v53 = vsel %vm36, %v22, 0
  %v56 = vsel %vm36, %v23, 0
  %v59 = vsel %vm36, %v24, 0
  %61 = vmatprep.subr.mxu0 0.0
  %62 = vmatpush1.msra.mxu0 %v25
  %63 = vmatprep.subr.mxu0 0.0
  %64 = vmatpush1.msra.mxu0 %v26
  %65 = vmatprep.subr.mxu0 0.0
  %66 = vmatpush1.msra.mxu0 %v27
  %67 = vmatprep.subr.mxu0 0.0
  %68 = vmatpush1.msra.mxu0 %v28
  %69 = vmatprep.subr.mxu0 0.0
  %70 = vmatpush1.msra.mxu0 0.0
  %71 = vmatprep.subr.mxu0 0.0
  %72 = vmatpush1.msra.mxu0 0.0
  %73 = vmatprep.subr.mxu0 0.0
  %74 = vmatpush1.msra.mxu0 0.0
  %75 = vmatprep.subr.mxu0 0.0
  %76 = vmatpush1.msra.mxu0 0.0
  %77 = vmatprep.subr.mxu0 0.0
  %78 = vmatpush1.msra.mxu0 0.0
  %79 = vmatprep.subr.mxu0 0.0
  %80 = vmatpush1.msra.mxu0 0.0
  %81 = vmatprep.subr.mxu0 0.0
  %82 = vmatpush1.msra.mxu0 0.0
  %83 = vmatprep.subr.mxu0 0.0
  %84 = vmatpush1.msra.mxu0 0.0
  %85 = vmatprep.subr.mxu0 0.0
  %86 = vmatpush1.msra.mxu0 0.0
  %87 = vmatprep.subr.mxu0 0.0
  %88 = vmatpush1.msra.mxu0 0.0
  %89 = vmatprep.subr.mxu0 0.0
  %90 = vmatpush1.msra.mxu0 0.0
  %91 = vmatprep.subr.mxu0 0.0
  %92 = vmatpush1.msra.mxu0 0.0
  %93 = vmatprep.subr.mxu0 0.0
  %94 = vmatpush1.msra.mxu0 0.0
  %95 = vmatprep.subr.mxu0 0.0
  %96 = vmatpush1.msra.mxu0 0.0
  %97 = vmatprep.subr.mxu0 0.0
  %98 = vmatpush1.msra.mxu0 0.0
  %99 = vmatprep.subr.mxu0 0.0
  %100 = vmatpush1.msra.mxu0 0.0
  %101 = vmatprep.subr.mxu0 0.0
  %102 = vmatpush1.msra.mxu0 0.0
  %103 = vmatprep.subr.mxu0 0.0
  %104 = vmatpush1.msra.mxu0 0.0
  %105 = vmatprep.subr.mxu0 0.0
  %106 = vmatpush1.msra.mxu0 0.0
  %107 = vmatprep.subr.mxu0 0.0
  %108 = vmatpush1.msra.mxu0 0.0
  %109 = vmatprep.subr.mxu0 0.0
  %110 = vmatpush1.msra.mxu0 0.0
  %111 = vmatprep.subr.mxu0 0.0
  %112 = vmatpush1.msra.mxu0 0.0
  %113 = vmatprep.subr.mxu0 0.0
  %114 = vmatpush1.msra.mxu0 0.0
  %115 = vmatprep.subr.mxu0 0.0
  %116 = vmatpush1.msra.mxu0 0.0
  %117 = vmatprep.subr.mxu0 0.0
  %118 = vmatpush1.msra.mxu0 0.0
  %119 = vmatprep.subr.mxu0 0.0
  %120 = vmatpush1.msra.mxu0 0.0
  %121 = vmatprep.subr.mxu0 0.0
  %122 = vmatpush1.msra.mxu0 0.0
  %123 = vmatprep.subr.mxu0 0.0
  %124 = vmatpush1.msra.mxu0 0.0
  %125 = vmatprep.mubr.f32.mxu0 0.0
  %126 = vmatmul.mubr.f32.gmra.mrb[0].mxu0 %v38
  %v127 = vpop.f32.mrb[0].mxu0
  %v128 = vadd.f32 %v34, %v127
  %v129 = vpop.f32.mrb[0].mxu0
  %130 = vmatprep.mubr.f32.mxu0 0.0
  %131 = vmatmul.mubr.f32.gmra.mrb[0].mxu0 %v41
  %v132 = vpop.f32.mrb[0].mxu0
  %v133 = vadd.f32 %v34, %v132
  %v134 = vpop.f32.mrb[0].mxu0
  %135 = vmatprep.mubr.f32.mxu0 0.0
  %136 = vmatmul.mubr.f32.gmra.mrb[0].mxu0 %v44
  %v137 = vpop.f32.mrb[0].mxu0
  %v138 = vadd.f32 %v34, %v137
  %v139 = vpop.f32.mrb[0].mxu0
  %140 = vmatprep.mubr.f32.mxu0 0.0
  %141 = vmatmul.mubr.f32.gmra.mrb[0].mxu0 %v47
  %v142 = vpop.f32.mrb[0].mxu0
  %v143 = vadd.f32 %v34, %v142
  %v144 = vpop.f32.mrb[0].mxu0
  %145 = vmatprep.mubr.f32.mxu0 0.0
  %146 = vmatmul.mubr.f32.gmra.mrb[0].mxu0 %v50
  %v147 = vpop.f32.mrb[0].mxu0
  %v148 = vadd.f32 %v34, %v147
  %v149 = vpop.f32.mrb[0].mxu0
  %150 = vmatprep.mubr.f32.mxu0 0.0
  %151 = vmatmul.mubr.f32.gmra.mrb[0].mxu0 %v53
  %v152 = vpop.f32.mrb[0].mxu0
  %v153 = vadd.f32 %v34, %v152
  %v154 = vpop.f32.mrb[0].mxu0
  %155 = vmatprep.mubr.f32.mxu0 0.0
  %156 = vmatmul.mubr.f32.gmra.mrb[0].mxu0 %v56
  %v157 = vpop.f32.mrb[0].mxu0
  %v158 = vadd.f32 %v34, %v157
  %v159 = vpop.f32.mrb[0].mxu0
  %160 = vmatprep.mubr.f32.mxu0 0.0
  %161 = vmatmul.mubr.f32.gmra.mrb[0].mxu0 %v59
  %v162 = vpop.f32.mrb[0].mxu0
  %v163 = vadd.f32 %v34, %v162
  %v164 = vpop.f32.mrb[0].mxu0
  %165 = vdwg.mxu0
  %v166 = vld [vmem:[%s2] sm:$0xff]
  %v167 = vld [vmem:[%s2 + $0x8] sm:$0xff]
  %v168 = vld [vmem:[%s2 + $0x10] sm:$0xff]
  %v169 = vld [vmem:[%s2 + $0x18] sm:$0xff]
  %v171 = vsel %vm36, 0.0, 0
  %173 = vmatprep.subr.mxu0 0.0
  %174 = vmatpush1.msra.mxu0 %v166
  %175 = vmatprep.subr.mxu0 0.0
  %176 = vmatpush1.msra.mxu0 %v167
  %177 = vmatprep.subr.mxu0 0.0
  %178 = vmatpush1.msra.mxu0 %v168
  %179 = vmatprep.subr.mxu0 0.0
  %180 = vmatpush1.msra.mxu0 %v169
  %181 = vmatprep.subr.mxu0 0.0
  %182 = vmatpush1.msra.mxu0 0.0
  %183 = vmatprep.subr.mxu0 0.0
  %184 = vmatpush1.msra.mxu0 0.0
  %185 = vmatprep.subr.mxu0 0.0
  %186 = vmatpush1.msra.mxu0 0.0
  %187 = vmatprep.subr.mxu0 0.0
  %188 = vmatpush1.msra.mxu0 0.0
  %189 = vmatprep.subr.mxu0 0.0
  %190 = vmatpush1.msra.mxu0 0.0
  %191 = vmatprep.subr.mxu0 0.0
  %192 = vmatpush1.msra.mxu0 0.0
  %193 = vmatprep.subr.mxu0 0.0
  %194 = vmatpush1.msra.mxu0 0.0
  %195 = vmatprep.subr.mxu0 0.0
  %196 = vmatpush1.msra.mxu0 0.0
  %197 = vmatprep.subr.mxu0 0.0
  %198 = vmatpush1.msra.mxu0 0.0
  %199 = vmatprep.subr.mxu0 0.0
  %200 = vmatpush1.msra.mxu0 0.0
  %201 = vmatprep.subr.mxu0 0.0
  %202 = vmatpush1.msra.mxu0 0.0
  %203 = vmatprep.subr.mxu0 0.0
  %204 = vmatpush1.msra.mxu0 0.0
  %205 = vmatprep.subr.mxu0 0.0
  %206 = vmatpush1.msra.mxu0 0.0
  %207 = vmatprep.subr.mxu0 0.0
  %208 = vmatpush1.msra.mxu0 0.0
  %209 = vmatprep.subr.mxu0 0.0
  %210 = vmatpush1.msra.mxu0 0.0
  %211 = vmatprep.subr.mxu0 0.0
  %212 = vmatpush1.msra.mxu0 0.0
  %213 = vmatprep.subr.mxu0 0.0
  %214 = vmatpush1.msra.mxu0 0.0
  %215 = vmatprep.subr.mxu0 0.0
  %216 = vmatpush1.msra.mxu0 0.0
  %217 = vmatprep.subr.mxu0 0.0
  %218 = vmatpush1.msra.mxu0 0.0
  %219 = vmatprep.subr.mxu0 0.0
  %220 = vmatpush1.msra.mxu0 0.0
  %221 = vmatprep.subr.mxu0 0.0
  %222 = vmatpush1.msra.mxu0 0.0
  %223 = vmatprep.subr.mxu0 0.0
  %224 = vmatpush1.msra.mxu0 0.0
  %225 = vmatprep.subr.mxu0 0.0
  %226 = vmatpush1.msra.mxu0 0.0
  %227 = vmatprep.subr.mxu0 0.0
  %228 = vmatpush1.msra.mxu0 0.0
  %229 = vmatprep.subr.mxu0 0.0
  %230 = vmatpush1.msra.mxu0 0.0
  %231 = vmatprep.subr.mxu0 0.0
  %232 = vmatpush1.msra.mxu0 0.0
  %233 = vmatprep.subr.mxu0 0.0
  %234 = vmatpush1.msra.mxu0 0.0
  %235 = vmatprep.subr.mxu0 0.0
  %236 = vmatpush1.msra.mxu0 0.0
  %237 = vmatprep.mubr.f32.mxu0 0.0
  %238 = vmatmul.mubr.f32.gmra.mrb[0].mxu0 %v171
  %v239 = vpop.f32.mrb[0].mxu0
  %v240 = vadd.f32 0.0, %v239
  %v241 = vpop.f32.mrb[0].mxu0
  %242 = vdwg.mxu0
  %v243 = vadd.f32 %v128, %v240
  %v244 = vxor.u32 %v243, 2147483648
  %v245 = vmul.f32 %v244, 1.442695
  %v246 = vpow.pop %v245
  %v247 = vadd.f32 %v246, 1.0
  %v248 = vrcp.pop %v247
  %v249 = vmul.f32 1.0, %v248
  %v250 = vtanh.pop %v243
  %v251 = vmul.f32 %v249, 0.0
  %253 = vrot.lane.b32.xlu0 %v250, 32
  %v254 = vpop.permute.xlu0 %253
  %v256 = vmul.f32 %v249, %v254
  %258 = vrot.lane.b32.xlu0 %v256, 32
  %v259 = vpop.permute.xlu0 %258
  %v261 = vadd.f32 %v251, %v259
  %v262 = vtanh.pop %v261
  %264 = vrot.lane.b32.xlu0 %v262, 32
  %v265 = vpop.permute.xlu0 %264
  %v267 = vmul.f32 %v249, %v265
  %269 = vrot.lane.b32.xlu0 %v267, 64
  %v270 = vpop.permute.xlu0 %269
  %272 = vst.msk [vmem:[%s4] sm:$0xff] %vm36, %v270
  %v273 = vsel %vm36, %v270, 0
  %275 = vmatprep.subr.mxu0 0.0
  %276 = vmatpush1.msra.mxu0 %v166
  %277 = vmatprep.subr.mxu0 0.0
  %278 = vmatpush1.msra.mxu0 %v167
  %279 = vmatprep.subr.mxu0 0.0
  %280 = vmatpush1.msra.mxu0 %v168
  %281 = vmatprep.subr.mxu0 0.0
  %282 = vmatpush1.msra.mxu0 %v169
  %283 = vmatprep.subr.mxu0 0.0
  %284 = vmatpush1.msra.mxu0 0.0
  %285 = vmatprep.subr.mxu0 0.0
  %286 = vmatpush1.msra.mxu0 0.0
  %287 = vmatprep.subr.mxu0 0.0
  %288 = vmatpush1.msra.mxu0 0.0
  %289 = vmatprep.subr.mxu0 0.0
  %290 = vmatpush1.msra.mxu0 0.0
  %291 = vmatprep.subr.mxu0 0.0
  %292 = vmatpush1.msra.mxu0 0.0
  %293 = vmatprep.subr.mxu0 0.0
  %294 = vmatpush1.msra.mxu0 0.0
  %295 = vmatprep.subr.mxu0 0.0
  %296 = vmatpush1.msra.mxu0 0.0
  %297 = vmatprep.subr.mxu0 0.0
  %298 = vmatpush1.msra.mxu0 0.0
  %299 = vmatprep.subr.mxu0 0.0
  %300 = vmatpush1.msra.mxu0 0.0
  %301 = vmatprep.subr.mxu0 0.0
  %302 = vmatpush1.msra.mxu0 0.0
  %303 = vmatprep.subr.mxu0 0.0
  %304 = vmatpush1.msra.mxu0 0.0
  %305 = vmatprep.subr.mxu0 0.0
  %306 = vmatpush1.msra.mxu0 0.0
  %307 = vmatprep.subr.mxu0 0.0
  %308 = vmatpush1.msra.mxu0 0.0
  %309 = vmatprep.subr.mxu0 0.0
  %310 = vmatpush1.msra.mxu0 0.0
  %311 = vmatprep.subr.mxu0 0.0
  %312 = vmatpush1.msra.mxu0 0.0
  %313 = vmatprep.subr.mxu0 0.0
  %314 = vmatpush1.msra.mxu0 0.0
  %315 = vmatprep.subr.mxu0 0.0
  %316 = vmatpush1.msra.mxu0 0.0
  %317 = vmatprep.subr.mxu0 0.0
  %318 = vmatpush1.msra.mxu0 0.0
  %319 = vmatprep.subr.mxu0 0.0
  %320 = vmatpush1.msra.mxu0 0.0
  %321 = vmatprep.subr.mxu0 0.0
  %322 = vmatpush1.msra.mxu0 0.0
  %323 = vmatprep.subr.mxu0 0.0
  %324 = vmatpush1.msra.mxu0 0.0
  %325 = vmatprep.subr.mxu0 0.0
  %326 = vmatpush1.msra.mxu0 0.0
  %327 = vmatprep.subr.mxu0 0.0
  %328 = vmatpush1.msra.mxu0 0.0
  %329 = vmatprep.subr.mxu0 0.0
  %330 = vmatpush1.msra.mxu0 0.0
  %331 = vmatprep.subr.mxu0 0.0
  %332 = vmatpush1.msra.mxu0 0.0
  %333 = vmatprep.subr.mxu0 0.0
  %334 = vmatpush1.msra.mxu0 0.0
  %335 = vmatprep.subr.mxu0 0.0
  %336 = vmatpush1.msra.mxu0 0.0
  %337 = vmatprep.subr.mxu0 0.0
  %338 = vmatpush1.msra.mxu0 0.0
  %339 = vmatprep.mubr.f32.mxu0 0.0
  %340 = vmatmul.mubr.f32.gmra.mrb[0].mxu0 %v273
  %v341 = vpop.f32.mrb[0].mxu0
  %v342 = vadd.f32 0.0, %v341
  %v343 = vpop.f32.mrb[0].mxu0
  %344 = vdwg.mxu0
  %v345 = vadd.f32 %v133, %v342
  %v346 = vxor.u32 %v345, 2147483648
  %v347 = vmul.f32 %v346, 1.442695
  %v348 = vpow.pop %v347
  %v349 = vadd.f32 %v348, 1.0
  %v350 = vrcp.pop %v349
  %v351 = vmul.f32 1.0, %v350
  %v352 = vtanh.pop %v345
  %v353 = vmul.f32 %v351, %v261
  %355 = vrot.lane.b32.xlu0 %v352, 32
  %v356 = vpop.permute.xlu0 %355
  %v358 = vmul.f32 %v351, %v356
  %360 = vrot.lane.b32.xlu0 %v358, 32
  %v361 = vpop.permute.xlu0 %360
  %v363 = vadd.f32 %v353, %v361
  %v364 = vtanh.pop %v363
  %366 = vrot.lane.b32.xlu0 %v364, 32
  %v367 = vpop.permute.xlu0 %366
  %v369 = vmul.f32 %v351, %v367
  %371 = vrot.lane.b32.xlu0 %v369, 96
  %v372 = vpop.permute.xlu0 %371
  %vm374 = vcmask 523520
  %375 = vst.msk [vmem:[%s4] sm:$0xff] %vm374, %v372
  %376 = vrot.lane.b32.xlu0 %v369, 64
  %v377 = vpop.permute.xlu0 %376
  %v378 = vsel %vm36, %v377, 0
  %380 = vmatprep.subr.mxu0 0.0
  %381 = vmatpush1.msra.mxu0 %v166
  %382 = vmatprep.subr.mxu0 0.0
  %383 = vmatpush1.msra.mxu0 %v167
  %384 = vmatprep.subr.mxu0 0.0
  %385 = vmatpush1.msra.mxu0 %v168
  %386 = vmatprep.subr.mxu0 0.0
  %387 = vmatpush1.msra.mxu0 %v169
  %388 = vmatprep.subr.mxu0 0.0
  %389 = vmatpush1.msra.mxu0 0.0
  %390 = vmatprep.subr.mxu0 0.0
  %391 = vmatpush1.msra.mxu0 0.0
  %392 = vmatprep.subr.mxu0 0.0
  %393 = vmatpush1.msra.mxu0 0.0
  %394 = vmatprep.subr.mxu0 0.0
  %395 = vmatpush1.msra.mxu0 0.0
  %396 = vmatprep.subr.mxu0 0.0
  %397 = vmatpush1.msra.mxu0 0.0
  %398 = vmatprep.subr.mxu0 0.0
  %399 = vmatpush1.msra.mxu0 0.0
  %400 = vmatprep.subr.mxu0 0.0
  %401 = vmatpush1.msra.mxu0 0.0
  %402 = vmatprep.subr.mxu0 0.0
  %403 = vmatpush1.msra.mxu0 0.0
  %404 = vmatprep.subr.mxu0 0.0
  %405 = vmatpush1.msra.mxu0 0.0
  %406 = vmatprep.subr.mxu0 0.0
  %407 = vmatpush1.msra.mxu0 0.0
  %408 = vmatprep.subr.mxu0 0.0
  %409 = vmatpush1.msra.mxu0 0.0
  %410 = vmatprep.subr.mxu0 0.0
  %411 = vmatpush1.msra.mxu0 0.0
  %412 = vmatprep.subr.mxu0 0.0
  %413 = vmatpush1.msra.mxu0 0.0
  %414 = vmatprep.subr.mxu0 0.0
  %415 = vmatpush1.msra.mxu0 0.0
  %416 = vmatprep.subr.mxu0 0.0
  %417 = vmatpush1.msra.mxu0 0.0
  %418 = vmatprep.subr.mxu0 0.0
  %419 = vmatpush1.msra.mxu0 0.0
  %420 = vmatprep.subr.mxu0 0.0
  %421 = vmatpush1.msra.mxu0 0.0
  %422 = vmatprep.subr.mxu0 0.0
  %423 = vmatpush1.msra.mxu0 0.0
  %424 = vmatprep.subr.mxu0 0.0
  %425 = vmatpush1.msra.mxu0 0.0
  %426 = vmatprep.subr.mxu0 0.0
  %427 = vmatpush1.msra.mxu0 0.0
  %428 = vmatprep.subr.mxu0 0.0
  %429 = vmatpush1.msra.mxu0 0.0
  %430 = vmatprep.subr.mxu0 0.0
  %431 = vmatpush1.msra.mxu0 0.0
  %432 = vmatprep.subr.mxu0 0.0
  %433 = vmatpush1.msra.mxu0 0.0
  %434 = vmatprep.subr.mxu0 0.0
  %435 = vmatpush1.msra.mxu0 0.0
  %436 = vmatprep.subr.mxu0 0.0
  %437 = vmatpush1.msra.mxu0 0.0
  %438 = vmatprep.subr.mxu0 0.0
  %439 = vmatpush1.msra.mxu0 0.0
  %440 = vmatprep.subr.mxu0 0.0
  %441 = vmatpush1.msra.mxu0 0.0
  %442 = vmatprep.subr.mxu0 0.0
  %443 = vmatpush1.msra.mxu0 0.0
  %444 = vmatprep.mubr.f32.mxu0 0.0
  %445 = vmatmul.mubr.f32.gmra.mrb[0].mxu0 %v378
  %v446 = vpop.f32.mrb[0].mxu0
  %v447 = vadd.f32 0.0, %v446
  %v448 = vpop.f32.mrb[0].mxu0
  %449 = vdwg.mxu0
  %v450 = vadd.f32 %v138, %v447
  %v451 = vxor.u32 %v450, 2147483648
  %v452 = vmul.f32 %v451, 1.442695
  %v453 = vpow.pop %v452
  %v454 = vadd.f32 %v453, 1.0
  %v455 = vrcp.pop %v454
  %v456 = vmul.f32 1.0, %v455
  %v457 = vtanh.pop %v450
  %v458 = vmul.f32 %v456, %v363
  %460 = vrot.lane.b32.xlu0 %v457, 32
  %v461 = vpop.permute.xlu0 %460
  %v463 = vmul.f32 %v456, %v461
  %465 = vrot.lane.b32.xlu0 %v463, 32
  %v466 = vpop.permute.xlu0 %465
  %v468 = vadd.f32 %v458, %v466
  %v469 = vtanh.pop %v468
  %471 = vrot.lane.b32.xlu0 %v469, 32
  %v472 = vpop.permute.xlu0 %471
  %v474 = vmul.f32 %v456, %v472
  %vm475 = vcmask 785920
  %476 = vst.msk [vmem:[%s4] sm:$0xff] %vm475, %v474
  %478 = vrot.lane.b32.xlu0 %v474, 64
  %v479 = vpop.permute.xlu0 %478
  %v480 = vsel %vm36, %v479, 0
  %482 = vmatprep.subr.mxu0 0.0
  %483 = vmatpush1.msra.mxu0 %v166
  %484 = vmatprep.subr.mxu0 0.0
  %485 = vmatpush1.msra.mxu0 %v167
  %486 = vmatprep.subr.mxu0 0.0
  %487 = vmatpush1.msra.mxu0 %v168
  %488 = vmatprep.subr.mxu0 0.0
  %489 = vmatpush1.msra.mxu0 %v169
  %490 = vmatprep.subr.mxu0 0.0
  %491 = vmatpush1.msra.mxu0 0.0
  %492 = vmatprep.subr.mxu0 0.0
  %493 = vmatpush1.msra.mxu0 0.0
  %494 = vmatprep.subr.mxu0 0.0
  %495 = vmatpush1.msra.mxu0 0.0
  %496 = vmatprep.subr.mxu0 0.0
  %497 = vmatpush1.msra.mxu0 0.0
  %498 = vmatprep.subr.mxu0 0.0
  %499 = vmatpush1.msra.mxu0 0.0
  %500 = vmatprep.subr.mxu0 0.0
  %501 = vmatpush1.msra.mxu0 0.0
  %502 = vmatprep.subr.mxu0 0.0
  %503 = vmatpush1.msra.mxu0 0.0
  %504 = vmatprep.subr.mxu0 0.0
  %505 = vmatpush1.msra.mxu0 0.0
  %506 = vmatprep.subr.mxu0 0.0
  %507 = vmatpush1.msra.mxu0 0.0
  %508 = vmatprep.subr.mxu0 0.0
  %509 = vmatpush1.msra.mxu0 0.0
  %510 = vmatprep.subr.mxu0 0.0
  %511 = vmatpush1.msra.mxu0 0.0
  %512 = vmatprep.subr.mxu0 0.0
  %513 = vmatpush1.msra.mxu0 0.0
  %514 = vmatprep.subr.mxu0 0.0
  %515 = vmatpush1.msra.mxu0 0.0
  %516 = vmatprep.subr.mxu0 0.0
  %517 = vmatpush1.msra.mxu0 0.0
  %518 = vmatprep.subr.mxu0 0.0
  %519 = vmatpush1.msra.mxu0 0.0
  %520 = vmatprep.subr.mxu0 0.0
  %521 = vmatpush1.msra.mxu0 0.0
  %522 = vmatprep.subr.mxu0 0.0
  %523 = vmatpush1.msra.mxu0 0.0
  %524 = vmatprep.subr.mxu0 0.0
  %525 = vmatpush1.msra.mxu0 0.0
  %526 = vmatprep.subr.mxu0 0.0
  %527 = vmatpush1.msra.mxu0 0.0
  %528 = vmatprep.subr.mxu0 0.0
  %529 = vmatpush1.msra.mxu0 0.0
  %530 = vmatprep.subr.mxu0 0.0
  %531 = vmatpush1.msra.mxu0 0.0
  %532 = vmatprep.subr.mxu0 0.0
  %533 = vmatpush1.msra.mxu0 0.0
  %534 = vmatprep.subr.mxu0 0.0
  %535 = vmatpush1.msra.mxu0 0.0
  %536 = vmatprep.subr.mxu0 0.0
  %537 = vmatpush1.msra.mxu0 0.0
  %538 = vmatprep.subr.mxu0 0.0
  %539 = vmatpush1.msra.mxu0 0.0
  %540 = vmatprep.subr.mxu0 0.0
  %541 = vmatpush1.msra.mxu0 0.0
  %542 = vmatprep.subr.mxu0 0.0
  %543 = vmatpush1.msra.mxu0 0.0
  %544 = vmatprep.subr.mxu0 0.0
  %545 = vmatpush1.msra.mxu0 0.0
  %546 = vmatprep.mubr.f32.mxu0 0.0
  %547 = vmatmul.mubr.f32.gmra.mrb[0].mxu0 %v480
  %v548 = vpop.f32.mrb[0].mxu0
  %v549 = vadd.f32 0.0, %v548
  %v550 = vpop.f32.mrb[0].mxu0
  %551 = vdwg.mxu0
  %v552 = vadd.f32 %v143, %v549
  %v553 = vxor.u32 %v552, 2147483648
  %v554 = vmul.f32 %v553, 1.442695
  %v555 = vpow.pop %v554
  %v556 = vadd.f32 %v555, 1.0
  %v557 = vrcp.pop %v556
  %v558 = vmul.f32 1.0, %v557
  %v559 = vtanh.pop %v552
  %v560 = vmul.f32 %v558, %v468
  %562 = vrot.lane.b32.xlu0 %v559, 32
  %v563 = vpop.permute.xlu0 %562
  %v565 = vmul.f32 %v558, %v563
  %567 = vrot.lane.b32.xlu0 %v565, 32
  %v568 = vpop.permute.xlu0 %567
  %v570 = vadd.f32 %v560, %v568
  %v571 = vtanh.pop %v570
  %573 = vrot.lane.b32.xlu0 %v571, 32
  %v574 = vpop.permute.xlu0 %573
  %v576 = vmul.f32 %v558, %v574
  %578 = vrot.lane.b32.xlu0 %v576, 32
  %v579 = vpop.permute.xlu0 %578
  %vm581 = vcmask 1048320
  %582 = vst.msk [vmem:[%s4] sm:$0xff] %vm581, %v579
  %583 = vrot.lane.b32.xlu0 %v576, 64
  %v584 = vpop.permute.xlu0 %583
  %v585 = vsel %vm36, %v584, 0
  %587 = vmatprep.subr.mxu0 0.0
  %588 = vmatpush1.msra.mxu0 %v166
  %589 = vmatprep.subr.mxu0 0.0
  %590 = vmatpush1.msra.mxu0 %v167
  %591 = vmatprep.subr.mxu0 0.0
  %592 = vmatpush1.msra.mxu0 %v168
  %593 = vmatprep.subr.mxu0 0.0
  %594 = vmatpush1.msra.mxu0 %v169
  %595 = vmatprep.subr.mxu0 0.0
  %596 = vmatpush1.msra.mxu0 0.0
  %597 = vmatprep.subr.mxu0 0.0
  %598 = vmatpush1.msra.mxu0 0.0
  %599 = vmatprep.subr.mxu0 0.0
  %600 = vmatpush1.msra.mxu0 0.0
  %601 = vmatprep.subr.mxu0 0.0
  %602 = vmatpush1.msra.mxu0 0.0
  %603 = vmatprep.subr.mxu0 0.0
  %604 = vmatpush1.msra.mxu0 0.0
  %605 = vmatprep.subr.mxu0 0.0
  %606 = vmatpush1.msra.mxu0 0.0
  %607 = vmatprep.subr.mxu0 0.0
  %608 = vmatpush1.msra.mxu0 0.0
  %609 = vmatprep.subr.mxu0 0.0
  %610 = vmatpush1.msra.mxu0 0.0
  %611 = vmatprep.subr.mxu0 0.0
  %612 = vmatpush1.msra.mxu0 0.0
  %613 = vmatprep.subr.mxu0 0.0
  %614 = vmatpush1.msra.mxu0 0.0
  %615 = vmatprep.subr.mxu0 0.0
  %616 = vmatpush1.msra.mxu0 0.0
  %617 = vmatprep.subr.mxu0 0.0
  %618 = vmatpush1.msra.mxu0 0.0
  %619 = vmatprep.subr.mxu0 0.0
  %620 = vmatpush1.msra.mxu0 0.0
  %621 = vmatprep.subr.mxu0 0.0
  %622 = vmatpush1.msra.mxu0 0.0
  %623 = vmatprep.subr.mxu0 0.0
  %624 = vmatpush1.msra.mxu0 0.0
  %625 = vmatprep.subr.mxu0 0.0
  %626 = vmatpush1.msra.mxu0 0.0
  %627 = vmatprep.subr.mxu0 0.0
  %628 = vmatpush1.msra.mxu0 0.0
  %629 = vmatprep.subr.mxu0 0.0
  %630 = vmatpush1.msra.mxu0 0.0
  %631 = vmatprep.subr.mxu0 0.0
  %632 = vmatpush1.msra.mxu0 0.0
  %633 = vmatprep.subr.mxu0 0.0
  %634 = vmatpush1.msra.mxu0 0.0
  %635 = vmatprep.subr.mxu0 0.0
  %636 = vmatpush1.msra.mxu0 0.0
  %637 = vmatprep.subr.mxu0 0.0
  %638 = vmatpush1.msra.mxu0 0.0
  %639 = vmatprep.subr.mxu0 0.0
  %640 = vmatpush1.msra.mxu0 0.0
  %641 = vmatprep.subr.mxu0 0.0
  %642 = vmatpush1.msra.mxu0 0.0
  %643 = vmatprep.subr.mxu0 0.0
  %644 = vmatpush1.msra.mxu0 0.0
  %645 = vmatprep.subr.mxu0 0.0
  %646 = vmatpush1.msra.mxu0 0.0
  %647 = vmatprep.subr.mxu0 0.0
  %648 = vmatpush1.msra.mxu0 0.0
  %649 = vmatprep.subr.mxu0 0.0
  %650 = vmatpush1.msra.mxu0 0.0
  %651 = vmatprep.mubr.f32.mxu0 0.0
  %652 = vmatmul.mubr.f32.gmra.mrb[0].mxu0 %v585
  %v653 = vpop.f32.mrb[0].mxu0
  %v654 = vadd.f32 0.0, %v653
  %v655 = vpop.f32.mrb[0].mxu0
  %656 = vdwg.mxu0
  %v657 = vadd.f32 %v148, %v654
  %v658 = vxor.u32 %v657, 2147483648
  %v659 = vmul.f32 %v658, 1.442695
  %v660 = vpow.pop %v659
  %v661 = vadd.f32 %v660, 1.0
  %v662 = vrcp.pop %v661
  %v663 = vmul.f32 1.0, %v662
  %v664 = vtanh.pop %v657
  %v665 = vmul.f32 %v663, %v570
  %667 = vrot.lane.b32.xlu0 %v664, 32
  %v668 = vpop.permute.xlu0 %667
  %v670 = vmul.f32 %v663, %v668
  %672 = vrot.lane.b32.xlu0 %v670, 32
  %v673 = vpop.permute.xlu0 %672
  %v675 = vadd.f32 %v665, %v673
  %v676 = vtanh.pop %v675
  %678 = vrot.lane.b32.xlu0 %v676, 32
  %v679 = vpop.permute.xlu0 %678
  %v681 = vmul.f32 %v663, %v679
  %683 = vrot.lane.b32.xlu0 %v681, 64
  %v684 = vpop.permute.xlu0 %683
  %686 = vst.msk [vmem:[%s4 + $0x8] sm:$0xff] %vm36, %v684
  %v687 = vsel %vm36, %v684, 0
  %689 = vmatprep.subr.mxu0 0.0
  %690 = vmatpush1.msra.mxu0 %v166
  %691 = vmatprep.subr.mxu0 0.0
  %692 = vmatpush1.msra.mxu0 %v167
  %693 = vmatprep.subr.mxu0 0.0
  %694 = vmatpush1.msra.mxu0 %v168
  %695 = vmatprep.subr.mxu0 0.0
  %696 = vmatpush1.msra.mxu0 %v169
  %697 = vmatprep.subr.mxu0 0.0
  %698 = vmatpush1.msra.mxu0 0.0
  %699 = vmatprep.subr.mxu0 0.0
  %700 = vmatpush1.msra.mxu0 0.0
  %701 = vmatprep.subr.mxu0 0.0
  %702 = vmatpush1.msra.mxu0 0.0
  %703 = vmatprep.subr.mxu0 0.0
  %704 = vmatpush1.msra.mxu0 0.0
  %705 = vmatprep.subr.mxu0 0.0
  %706 = vmatpush1.msra.mxu0 0.0
  %707 = vmatprep.subr.mxu0 0.0
  %708 = vmatpush1.msra.mxu0 0.0
  %709 = vmatprep.subr.mxu0 0.0
  %710 = vmatpush1.msra.mxu0 0.0
  %711 = vmatprep.subr.mxu0 0.0
  %712 = vmatpush1.msra.mxu0 0.0
  %713 = vmatprep.subr.mxu0 0.0
  %714 = vmatpush1.msra.mxu0 0.0
  %715 = vmatprep.subr.mxu0 0.0
  %716 = vmatpush1.msra.mxu0 0.0
  %717 = vmatprep.subr.mxu0 0.0
  %718 = vmatpush1.msra.mxu0 0.0
  %719 = vmatprep.subr.mxu0 0.0
  %720 = vmatpush1.msra.mxu0 0.0
  %721 = vmatprep.subr.mxu0 0.0
  %722 = vmatpush1.msra.mxu0 0.0
  %723 = vmatprep.subr.mxu0 0.0
  %724 = vmatpush1.msra.mxu0 0.0
  %725 = vmatprep.subr.mxu0 0.0
  %726 = vmatpush1.msra.mxu0 0.0
  %727 = vmatprep.subr.mxu0 0.0
  %728 = vmatpush1.msra.mxu0 0.0
  %729 = vmatprep.subr.mxu0 0.0
  %730 = vmatpush1.msra.mxu0 0.0
  %731 = vmatprep.subr.mxu0 0.0
  %732 = vmatpush1.msra.mxu0 0.0
  %733 = vmatprep.subr.mxu0 0.0
  %734 = vmatpush1.msra.mxu0 0.0
  %735 = vmatprep.subr.mxu0 0.0
  %736 = vmatpush1.msra.mxu0 0.0
  %737 = vmatprep.subr.mxu0 0.0
  %738 = vmatpush1.msra.mxu0 0.0
  %739 = vmatprep.subr.mxu0 0.0
  %740 = vmatpush1.msra.mxu0 0.0
  %741 = vmatprep.subr.mxu0 0.0
  %742 = vmatpush1.msra.mxu0 0.0
  %743 = vmatprep.subr.mxu0 0.0
  %744 = vmatpush1.msra.mxu0 0.0
  %745 = vmatprep.subr.mxu0 0.0
  %746 = vmatpush1.msra.mxu0 0.0
  %747 = vmatprep.subr.mxu0 0.0
  %748 = vmatpush1.msra.mxu0 0.0
  %749 = vmatprep.subr.mxu0 0.0
  %750 = vmatpush1.msra.mxu0 0.0
  %751 = vmatprep.subr.mxu0 0.0
  %752 = vmatpush1.msra.mxu0 0.0
  %753 = vmatprep.mubr.f32.mxu0 0.0
  %754 = vmatmul.mubr.f32.gmra.mrb[0].mxu0 %v687
  %v755 = vpop.f32.mrb[0].mxu0
  %v756 = vadd.f32 0.0, %v755
  %v757 = vpop.f32.mrb[0].mxu0
  %758 = vdwg.mxu0
  %v759 = vadd.f32 %v153, %v756
  %v760 = vxor.u32 %v759, 2147483648
  %v761 = vmul.f32 %v760, 1.442695
  %v762 = vpow.pop %v761
  %v763 = vadd.f32 %v762, 1.0
  %v764 = vrcp.pop %v763
  %v765 = vmul.f32 1.0, %v764
  %v766 = vtanh.pop %v759
  %v767 = vmul.f32 %v765, %v675
  %769 = vrot.lane.b32.xlu0 %v766, 32
  %v770 = vpop.permute.xlu0 %769
  %v772 = vmul.f32 %v765, %v770
  %774 = vrot.lane.b32.xlu0 %v772, 32
  %v775 = vpop.permute.xlu0 %774
  %v777 = vadd.f32 %v767, %v775
  %v778 = vtanh.pop %v777
  %780 = vrot.lane.b32.xlu0 %v778, 32
  %v781 = vpop.permute.xlu0 %780
  %v783 = vmul.f32 %v765, %v781
  %785 = vrot.lane.b32.xlu0 %v783, 96
  %v786 = vpop.permute.xlu0 %785
  %788 = vst.msk [vmem:[%s4 + $0x8] sm:$0xff] %vm374, %v786
  %789 = vrot.lane.b32.xlu0 %v783, 64
  %v790 = vpop.permute.xlu0 %789
  %v791 = vsel %vm36, %v790, 0
  %793 = vmatprep.subr.mxu0 0.0
  %794 = vmatpush1.msra.mxu0 %v166
  %795 = vmatprep.subr.mxu0 0.0
  %796 = vmatpush1.msra.mxu0 %v167
  %797 = vmatprep.subr.mxu0 0.0
  %798 = vmatpush1.msra.mxu0 %v168
  %799 = vmatprep.subr.mxu0 0.0
  %800 = vmatpush1.msra.mxu0 %v169
  %801 = vmatprep.subr.mxu0 0.0
  %802 = vmatpush1.msra.mxu0 0.0
  %803 = vmatprep.subr.mxu0 0.0
  %804 = vmatpush1.msra.mxu0 0.0
  %805 = vmatprep.subr.mxu0 0.0
  %806 = vmatpush1.msra.mxu0 0.0
  %807 = vmatprep.subr.mxu0 0.0
  %808 = vmatpush1.msra.mxu0 0.0
  %809 = vmatprep.subr.mxu0 0.0
  %810 = vmatpush1.msra.mxu0 0.0
  %811 = vmatprep.subr.mxu0 0.0
  %812 = vmatpush1.msra.mxu0 0.0
  %813 = vmatprep.subr.mxu0 0.0
  %814 = vmatpush1.msra.mxu0 0.0
  %815 = vmatprep.subr.mxu0 0.0
  %816 = vmatpush1.msra.mxu0 0.0
  %817 = vmatprep.subr.mxu0 0.0
  %818 = vmatpush1.msra.mxu0 0.0
  %819 = vmatprep.subr.mxu0 0.0
  %820 = vmatpush1.msra.mxu0 0.0
  %821 = vmatprep.subr.mxu0 0.0
  %822 = vmatpush1.msra.mxu0 0.0
  %823 = vmatprep.subr.mxu0 0.0
  %824 = vmatpush1.msra.mxu0 0.0
  %825 = vmatprep.subr.mxu0 0.0
  %826 = vmatpush1.msra.mxu0 0.0
  %827 = vmatprep.subr.mxu0 0.0
  %828 = vmatpush1.msra.mxu0 0.0
  %829 = vmatprep.subr.mxu0 0.0
  %830 = vmatpush1.msra.mxu0 0.0
  %831 = vmatprep.subr.mxu0 0.0
  %832 = vmatpush1.msra.mxu0 0.0
  %833 = vmatprep.subr.mxu0 0.0
  %834 = vmatpush1.msra.mxu0 0.0
  %835 = vmatprep.subr.mxu0 0.0
  %836 = vmatpush1.msra.mxu0 0.0
  %837 = vmatprep.subr.mxu0 0.0
  %838 = vmatpush1.msra.mxu0 0.0
  %839 = vmatprep.subr.mxu0 0.0
  %840 = vmatpush1.msra.mxu0 0.0
  %841 = vmatprep.subr.mxu0 0.0
  %842 = vmatpush1.msra.mxu0 0.0
  %843 = vmatprep.subr.mxu0 0.0
  %844 = vmatpush1.msra.mxu0 0.0
  %845 = vmatprep.subr.mxu0 0.0
  %846 = vmatpush1.msra.mxu0 0.0
  %847 = vmatprep.subr.mxu0 0.0
  %848 = vmatpush1.msra.mxu0 0.0
  %849 = vmatprep.subr.mxu0 0.0
  %850 = vmatpush1.msra.mxu0 0.0
  %851 = vmatprep.subr.mxu0 0.0
  %852 = vmatpush1.msra.mxu0 0.0
  %853 = vmatprep.subr.mxu0 0.0
  %854 = vmatpush1.msra.mxu0 0.0
  %855 = vmatprep.subr.mxu0 0.0
  %856 = vmatpush1.msra.mxu0 0.0
  %857 = vmatprep.mubr.f32.mxu0 0.0
  %858 = vmatmul.mubr.f32.gmra.mrb[0].mxu0 %v791
  %v859 = vpop.f32.mrb[0].mxu0
  %v860 = vadd.f32 0.0, %v859
  %v861 = vpop.f32.mrb[0].mxu0
  %862 = vdwg.mxu0
  %v863 = vadd.f32 %v158, %v860
  %v864 = vxor.u32 %v863, 2147483648
  %v865 = vmul.f32 %v864, 1.442695
  %v866 = vpow.pop %v865
  %v867 = vadd.f32 %v866, 1.0
  %v868 = vrcp.pop %v867
  %v869 = vmul.f32 1.0, %v868
  %v870 = vtanh.pop %v863
  %v871 = vmul.f32 %v869, %v777
  %873 = vrot.lane.b32.xlu0 %v870, 32
  %v874 = vpop.permute.xlu0 %873
  %v876 = vmul.f32 %v869, %v874
  %878 = vrot.lane.b32.xlu0 %v876, 32
  %v879 = vpop.permute.xlu0 %878
  %v881 = vadd.f32 %v871, %v879
  %v882 = vtanh.pop %v881
  %884 = vrot.lane.b32.xlu0 %v882, 32
  %v885 = vpop.permute.xlu0 %884
  %v887 = vmul.f32 %v869, %v885
  %888 = vst.msk [vmem:[%s4 + $0x8] sm:$0xff] %vm475, %v887
  %890 = vrot.lane.b32.xlu0 %v887, 64
  %v891 = vpop.permute.xlu0 %890
  %v892 = vsel %vm36, %v891, 0
  %894 = vmatprep.subr.mxu0 0.0
  %895 = vmatpush1.msra.mxu0 %v166
  %896 = vmatprep.subr.mxu0 0.0
  %897 = vmatpush1.msra.mxu0 %v167
  %898 = vmatprep.subr.mxu0 0.0
  %899 = vmatpush1.msra.mxu0 %v168
  %900 = vmatprep.subr.mxu0 0.0
  %901 = vmatpush1.msra.mxu0 %v169
  %902 = vmatprep.subr.mxu0 0.0
  %903 = vmatpush1.msra.mxu0 0.0
  %904 = vmatprep.subr.mxu0 0.0
  %905 = vmatpush1.msra.mxu0 0.0
  %906 = vmatprep.subr.mxu0 0.0
  %907 = vmatpush1.msra.mxu0 0.0
  %908 = vmatprep.subr.mxu0 0.0
  %909 = vmatpush1.msra.mxu0 0.0
  %910 = vmatprep.subr.mxu0 0.0
  %911 = vmatpush1.msra.mxu0 0.0
  %912 = vmatprep.subr.mxu0 0.0
  %913 = vmatpush1.msra.mxu0 0.0
  %914 = vmatprep.subr.mxu0 0.0
  %915 = vmatpush1.msra.mxu0 0.0
  %916 = vmatprep.subr.mxu0 0.0
  %917 = vmatpush1.msra.mxu0 0.0
  %918 = vmatprep.subr.mxu0 0.0
  %919 = vmatpush1.msra.mxu0 0.0
  %920 = vmatprep.subr.mxu0 0.0
  %921 = vmatpush1.msra.mxu0 0.0
  %922 = vmatprep.subr.mxu0 0.0
  %923 = vmatpush1.msra.mxu0 0.0
  %924 = vmatprep.subr.mxu0 0.0
  %925 = vmatpush1.msra.mxu0 0.0
  %926 = vmatprep.subr.mxu0 0.0
  %927 = vmatpush1.msra.mxu0 0.0
  %928 = vmatprep.subr.mxu0 0.0
  %929 = vmatpush1.msra.mxu0 0.0
  %930 = vmatprep.subr.mxu0 0.0
  %931 = vmatpush1.msra.mxu0 0.0
  %932 = vmatprep.subr.mxu0 0.0
  %933 = vmatpush1.msra.mxu0 0.0
  %934 = vmatprep.subr.mxu0 0.0
  %935 = vmatpush1.msra.mxu0 0.0
  %936 = vmatprep.subr.mxu0 0.0
  %937 = vmatpush1.msra.mxu0 0.0
  %938 = vmatprep.subr.mxu0 0.0
  %939 = vmatpush1.msra.mxu0 0.0
  %940 = vmatprep.subr.mxu0 0.0
  %941 = vmatpush1.msra.mxu0 0.0
  %942 = vmatprep.subr.mxu0 0.0
  %943 = vmatpush1.msra.mxu0 0.0
  %944 = vmatprep.subr.mxu0 0.0
  %945 = vmatpush1.msra.mxu0 0.0
  %946 = vmatprep.subr.mxu0 0.0
  %947 = vmatpush1.msra.mxu0 0.0
  %948 = vmatprep.subr.mxu0 0.0
  %949 = vmatpush1.msra.mxu0 0.0
  %950 = vmatprep.subr.mxu0 0.0
  %951 = vmatpush1.msra.mxu0 0.0
  %952 = vmatprep.subr.mxu0 0.0
  %953 = vmatpush1.msra.mxu0 0.0
  %954 = vmatprep.subr.mxu0 0.0
  %955 = vmatpush1.msra.mxu0 0.0
  %956 = vmatprep.subr.mxu0 0.0
  %957 = vmatpush1.msra.mxu0 0.0
  %958 = vmatprep.mubr.f32.mxu0 0.0
  %959 = vmatmul.mubr.f32.gmra.mrb[0].mxu0 %v892
  %v960 = vpop.f32.mrb[0].mxu0
  %v961 = vadd.f32 0.0, %v960
  %v962 = vpop.f32.mrb[0].mxu0
  %963 = vdwg.mxu0
  %v964 = vadd.f32 %v163, %v961
  %v965 = vxor.u32 %v964, 2147483648
  %v966 = vmul.f32 %v965, 1.442695
  %v967 = vpow.pop %v966
  %v968 = vadd.f32 %v967, 1.0
  %v969 = vrcp.pop %v968
  %v970 = vmul.f32 1.0, %v969
  %v971 = vtanh.pop %v964
  %v972 = vmul.f32 %v970, %v881
  %974 = vrot.lane.b32.xlu0 %v971, 32
  %v975 = vpop.permute.xlu0 %974
  %v977 = vmul.f32 %v970, %v975
  %979 = vrot.lane.b32.xlu0 %v977, 32
  %v980 = vpop.permute.xlu0 %979
  %v982 = vadd.f32 %v972, %v980
  %v983 = vtanh.pop %v982
  %985 = vrot.lane.b32.xlu0 %v983, 32
  %v986 = vpop.permute.xlu0 %985
  %v988 = vmul.f32 %v970, %v986
  %990 = vrot.lane.b32.xlu0 %v988, 32
  %v991 = vpop.permute.xlu0 %990
  %993 = vst.msk [vmem:[%s4 + $0x8] sm:$0xff] %vm581, %v991
  // Predicated region
  $region18: #{bidir_lstm_pallas.1} parent=0 // pred_check
    _
  $region19: #{bidir_lstm_pallas.1} parent=0 // pred_check_branch
    %995 = sbr.rel (0) target = $region21
  $region20: #{bidir_lstm_pallas.1} parent=0 // pred_region
    _
  $region21: #{bidir_lstm_pallas.1} parent=0 // pred_fallthru
    _
  // Predicated region
  $region22: #{bidir_lstm_pallas.1} parent=0 // pred_check
    _
  $region23: #{bidir_lstm_pallas.1} parent=0 // pred_check_branch
    %997 = sbr.rel (0) target = $region25
  $region24: #{bidir_lstm_pallas.1} parent=0 // pred_region
    _
  $region25: #{bidir_lstm_pallas.1} parent=0 // pred_fallthru
    _

</llo_original>
